<compile_context>
chip_gen: v5e
topology: v5e:2x2
jax: 0.10.0
libtpu: 0.0.40
codegen_flags: <defaults>
</compile_context>

<pallas_src>
import functools

import jax
import jax.numpy as jnp
from jax.experimental import pallas as pl
from jax.experimental.pallas import tpu as pltpu

_LANE = 128
_VMEM_LIMIT_BYTES = 56 * 2 ** 20         # safe ceiling on v7x (64 MiB / TC)
_SINGLE_PASS_VMEM_BUDGET = 40 * 2 ** 20  # in+out double-buffered block budget
_TILED_TARGET_BLOCK_BYTES = 4 * 2 ** 20  # ~4 MiB x-tiles in the fallback path


def _round_up(a, m):
    return ((a + m - 1) // m) * m


def _fc_scale(pooled, w1t, w2t):
    """pooled: (C, 2) f32 [avg col | max col] -> (C, 1) scale = 1 + gate."""
    h = jnp.dot(w1t, pooled, preferred_element_type=jnp.float32)   # (Crp, 2)
    h = jnp.maximum(h, 0.0)
    g = jnp.dot(w2t, h, preferred_element_type=jnp.float32)        # (C, 2)
    gate = jax.nn.sigmoid(g[:, 0:1] + g[:, 1:2])                   # (C, 1)
    return gate + 1.0                                              # fuse residual


def _canet_fused_kernel(x_ref, w1t_ref, w2t_ref, o_ref, *, hw_true):
    # Single pass: pool + fc + gate + scaled residual for one batch element.
    # x_ref/o_ref: (C, HWp); w1t_ref: (Crp, C); w2t_ref: (C, Crp).
    x = x_ref[...]
    xf = x.astype(jnp.float32)
    hw_pad = x.shape[-1]

    avg = jnp.sum(xf, axis=-1, keepdims=True) * (1.0 / hw_true)    # (C, 1)
    if hw_pad != hw_true:  # zero-padded lanes: mask them out of the max only
        lane = jax.lax.broadcasted_iota(jnp.int32, xf.shape, 1)
        xmax_src = jnp.where(lane < hw_true, xf, -jnp.inf)
    else:
        xmax_src = xf
    mx = jnp.max(xmax_src, axis=-1, keepdims=True)                 # (C, 1)

    scale = _fc_scale(jnp.concatenate([avg, mx], axis=-1),
                      w1t_ref[...], w2t_ref[...])                  # (C, 1)
    o_ref[...] = (x * scale.astype(x.dtype)).astype(o_ref.dtype)


def _canet_pool_kernel(x_ref, w1t_ref, w2t_ref, scale_ref, sum_acc, max_acc,
                       *, hw_true, hw_pad, hw_tile):
    # Tiled path, phase A: accumulate sum/max across HW tiles, emit the
    # per-channel scale (1 + gate) on the last tile.
    h = pl.program_id(1)

    @pl.when(h == 0)
    def _():
        sum_acc[...] = jnp.zeros_like(sum_acc)
        max_acc[...] = jnp.full_like(max_acc, -jnp.inf)

    xf = x_ref[...].astype(jnp.float32)                            # (C, T)
    sum_acc[...] += jnp.sum(xf, axis=-1, keepdims=True)
    if hw_pad != hw_true:
        lane = jax.lax.broadcasted_iota(jnp.int32, xf.shape, 1) + h * hw_tile
        xmax_src = jnp.where(lane < hw_true, xf, -jnp.inf)
    else:
        xmax_src = xf
    max_acc[...] = jnp.maximum(max_acc[...],
                               jnp.max(xmax_src, axis=-1, keepdims=True))

    @pl.when(h == pl.num_programs(1) - 1)
    def _():
        pooled = jnp.concatenate(
            [sum_acc[...] * (1.0 / hw_true), max_acc[...]], axis=-1)  # (C, 2)
        scale_ref[...] = _fc_scale(pooled, w1t_ref[...], w2t_ref[...])


def _canet_scale_kernel(x_ref, scale_ref, o_ref):
    # Tiled path, phase B: out = x * scale (residual already folded in).
    x = x_ref[...]
    o_ref[...] = (x * scale_ref[...].astype(x.dtype)).astype(o_ref.dtype)


def canet_forward(x_nchw, w1, w2, *, hw_tile=None):
    """CANet forward.

    x_nchw: (B, C, H, W) float32 or bfloat16.
    w1: (C, C//r) first linear weight stored (in, out); w2: (C//r, C).
    hw_tile: optional multiple of 128; forces the HW-tiled two-phase path.
    """
    B, C, H, W = x_nchw.shape
    HW = H * W
    Cr = w1.shape[1]
    dtype = x_nchw.dtype
    itemsize = jnp.dtype(dtype).itemsize

    # Pre-transpose weights (column-oriented fc => no in-kernel transpose) and
    # pad the bottleneck dim to a sublane multiple (zero rows/cols are exact
    # no-ops through ReLU + the second matmul).
    crp = _round_up(max(Cr, 1), 8)
    w1t = jnp.transpose(w1).astype(jnp.float32)          # (Cr, C)
    w2t = jnp.transpose(w2).astype(jnp.float32)          # (C, Cr)
    if crp != Cr:
        w1t = jnp.pad(w1t, ((0, crp - Cr), (0, 0)))
        w2t = jnp.pad(w2t, ((0, 0), (0, crp - Cr)))

    # Path / tiling decision (VMEM-aware, lane-dense padding).
    if hw_tile is None:
        hw_pad = _round_up(HW, _LANE)
        block_bytes = C * hw_pad * itemsize
        vmem_est = 4 * block_bytes + 4 * (w1t.size + w2t.size) * 4
        if vmem_est > _SINGLE_PASS_VMEM_BUDGET:
            hw_tile = max(_LANE,
                          (_TILED_TARGET_BLOCK_BYTES // (C * itemsize))
                          // _LANE * _LANE)
            hw_tile = min(hw_tile, hw_pad)
    else:
        assert hw_tile % _LANE == 0, "hw_tile must be a multiple of 128"

    if hw_tile is not None:
        hw_pad = _round_up(HW, hw_tile)

    x3 = x_nchw.reshape(B, C, HW)
    if hw_pad != HW:
        x3 = jnp.pad(x3, ((0, 0), (0, 0), (0, hw_pad - HW)))

    if hw_tile is None:
        # ---------- single pass: pool + gate + scale in one kernel ----------
        kernel = functools.partial(_canet_fused_kernel, hw_true=HW)
        out3 = pl.pallas_call(
            kernel,
            out_shape=jax.ShapeDtypeStruct((B, C, hw_pad), dtype),
            grid_spec=pltpu.PrefetchScalarGridSpec(
                num_scalar_prefetch=0,
                grid=(B,),
                in_specs=[
                    pl.BlockSpec((None, C, hw_pad), lambda b: (b, 0, 0)),
                    pl.BlockSpec((crp, C), lambda b: (0, 0)),
                    pl.BlockSpec((C, crp), lambda b: (0, 0)),
                ],
                out_specs=pl.BlockSpec((None, C, hw_pad), lambda b: (b, 0, 0)),
            ),
            compiler_params=pltpu.CompilerParams(
                dimension_semantics=("parallel",),
                vmem_limit_bytes=_VMEM_LIMIT_BYTES),
        )(x3, w1t, w2t)
    else:
        # ---------- HW-tiled fallback: pooling sweep + scaling sweep --------
        n_hw = hw_pad // hw_tile

        pool_kernel = functools.partial(
            _canet_pool_kernel, hw_true=HW, hw_pad=hw_pad, hw_tile=hw_tile)
        scale = pl.pallas_call(
            pool_kernel,
            out_shape=jax.ShapeDtypeStruct((B, C, 1), jnp.float32),
            grid_spec=pltpu.PrefetchScalarGridSpec(
                num_scalar_prefetch=0,
                grid=(B, n_hw),
                in_specs=[
                    pl.BlockSpec((None, C, hw_tile), lambda b, h: (b, 0, h)),
                    pl.BlockSpec((crp, C), lambda b, h: (0, 0)),
                    pl.BlockSpec((C, crp), lambda b, h: (0, 0)),
                ],
                out_specs=pl.BlockSpec((None, C, 1), lambda b, h: (b, 0, 0)),
                scratch_shapes=[pltpu.VMEM((C, 1), jnp.float32),
                                pltpu.VMEM((C, 1), jnp.float32)],
            ),
            compiler_params=pltpu.CompilerParams(
                dimension_semantics=("parallel", "arbitrary"),
                vmem_limit_bytes=_VMEM_LIMIT_BYTES),
        )(x3, w1t, w2t)

        out3 = pl.pallas_call(
            _canet_scale_kernel,
            out_shape=jax.ShapeDtypeStruct((B, C, hw_pad), dtype),
            grid_spec=pltpu.PrefetchScalarGridSpec(
                num_scalar_prefetch=0,
                grid=(B, n_hw),
                in_specs=[
                    pl.BlockSpec((None, C, hw_tile), lambda b, h: (b, 0, h)),
                    pl.BlockSpec((None, C, 1), lambda b, h: (b, 0, 0)),
                ],
                out_specs=pl.BlockSpec((None, C, hw_tile),
                                       lambda b, h: (b, 0, h)),
            ),
            compiler_params=pltpu.CompilerParams(
                dimension_semantics=("parallel", "parallel"),
                vmem_limit_bytes=_VMEM_LIMIT_BYTES),
        )(x3, scale)

    if hw_pad != HW:
        out3 = out3[:, :, :HW]
    return out3.reshape(B, C, H, W)


def reference_forward(x, w1, w2):
    # Pure-JAX reference matching the PyTorch module.
    avg = jnp.mean(x, axis=(2, 3))              # (B, C)
    mx = jnp.max(x, axis=(2, 3))                # (B, C)

    def fc(y):
        return jnp.maximum(y @ w1, 0.0) @ w2

    gate = jax.nn.sigmoid(fc(avg) + fc(mx))     # (B, C)
    return x * gate[:, :, None, None] + x


if __name__ == "__main__":
    key = jax.random.PRNGKey(0)
    k_x, k_w1, k_w2 = jax.random.split(key, 3)

    B, C, H, W = 2, 4, 16, 16
    reduction = 4
    Cr = C // reduction

    x = jax.random.normal(k_x, (B, C, H, W), dtype=jnp.float32)

    # Deterministic init mimicking PyTorch Linear default (uniform +/- 1/sqrt(fan_in)).
    # Stored as (in, out) so forward is y @ w.
    bound1 = 1.0 / (C ** 0.5)
    bound2 = 1.0 / (Cr ** 0.5)
    w1 = jax.random.uniform(k_w1, (C, Cr), jnp.float32, -bound1, bound1)
    w2 = jax.random.uniform(k_w2, (Cr, C), jnp.float32, -bound2, bound2)

    ref = reference_forward(x, w1, w2)

    # 1) single-pass fused path (fits in VMEM at this shape).
    out = jax.block_until_ready(canet_forward(x, w1, w2))
    assert out.shape == (B, C, H, W)
    assert jnp.allclose(out, ref, atol=1e-5, rtol=1e-5), "fused path mismatch"

    # 2) HW-tiled two-phase fallback (forced; exercises the large-shape path).
    out_t = jax.block_until_ready(canet_forward(x, w1, w2, hw_tile=128))
    assert jnp.allclose(out_t, ref, atol=1e-5, rtol=1e-5), "tiled path mismatch"

    # 3) bf16 I/O (pooling / fc / sigmoid stay in f32 inside the kernel).
    x_bf16 = x.astype(jnp.bfloat16)
    out_bf = jax.block_until_ready(canet_forward(x_bf16, w1, w2))
    ref_bf = reference_forward(x_bf16.astype(jnp.float32), w1, w2)
    assert out_bf.dtype == jnp.bfloat16
    assert jnp.allclose(out_bf.astype(jnp.float32), ref_bf,
                        atol=1e-1, rtol=5e-2), "bf16 path mismatch"

    print("KERNEL_OK")
</pallas_src>

<mosaic_0001>
module attributes {stable_mosaic.version = 11 : i64} {
  func.func @_canet_fused_kernel(%arg0: i32, %arg1: memref<1x4x256xf32, #tpu.memory_space<vmem>>, %arg2: memref<8x4xf32, #tpu.memory_space<vmem>>, %arg3: memref<4x8xf32, #tpu.memory_space<vmem>>, %arg4: memref<1x4x256xf32, #tpu.memory_space<vmem>>) attributes {dimension_semantics = [#tpu.dimension_semantics<parallel>], iteration_bounds = array<i64: 2>, scalar_prefetch = 0 : i64, scratch_operands = 0 : i64, tpu.core_type = #tpu.core_type<tc>, window_params = [{transform_indices = @transform_0, window_bounds = array<i64: 1, 4, 256>}, {pipeline_mode = #tpu.pipeline_mode<synchronous>, transform_indices = @transform_1, window_bounds = array<i64: 8, 4>}, {pipeline_mode = #tpu.pipeline_mode<synchronous>, transform_indices = @transform_2, window_bounds = array<i64: 4, 8>}, {transform_indices = @transform_3, window_bounds = array<i64: 1, 4, 256>}]} {
    %c0 = arith.constant 0 : index
    %c0_0 = arith.constant 0 : index
    %c0_1 = arith.constant 0 : index
    %0 = vector.load %arg1[%c0, %c0_0, %c0_1] : memref<1x4x256xf32, #tpu.memory_space<vmem>>, vector<1x4x256xf32>
    %1 = vector.shape_cast %0 : vector<1x4x256xf32> to vector<4x256xf32>
    %cst = arith.constant dense<0.000000e+00> : vector<4xf32>
    %2 = vector.multi_reduction <add>, %1, %cst [1] : vector<4x256xf32> to vector<4xf32>
    %3 = vector.shape_cast %2 : vector<4xf32> to vector<4x1xf32>
    %cst_2 = arith.constant 3.906250e-03 : f32
    %4 = vector.broadcast %cst_2 : f32 to vector<4x1xf32>
    %5 = arith.mulf %3, %4 : vector<4x1xf32>
    %cst_3 = arith.constant dense<0xFF800000> : vector<4xf32>
    %6 = vector.multi_reduction <maximumf>, %1, %cst_3 [1] : vector<4x256xf32> to vector<4xf32>
    %7 = vector.shape_cast %6 : vector<4xf32> to vector<4x1xf32>
    %8 = tpu.concatenate %5, %7 in 1 : vector<4x1xf32>, vector<4x1xf32> -> vector<4x2xf32>
    %c0_4 = arith.constant 0 : index
    %c0_5 = arith.constant 0 : index
    %9 = vector.load %arg2[%c0_4, %c0_5] : memref<8x4xf32, #tpu.memory_space<vmem>>, vector<8x4xf32>
    %c0_6 = arith.constant 0 : index
    %c0_7 = arith.constant 0 : index
    %10 = vector.load %arg3[%c0_6, %c0_7] : memref<4x8xf32, #tpu.memory_space<vmem>>, vector<4x8xf32>
    %cst_8 = arith.constant dense<0.000000e+00> : vector<8x2xf32>
    %11 = tpu.matmul %9, %8, %cst_8 {dimension_numbers = #tpu.dot_dimension_numbers<[1], [0], [0], [1], [0, 0, 1, 1], [], []>} : vector<8x4xf32>, vector<4x2xf32>, vector<8x2xf32> -> vector<8x2xf32>
    %cst_9 = arith.constant 0.000000e+00 : f32
    %12 = vector.broadcast %cst_9 : f32 to vector<8x2xf32>
    %13 = arith.maximumf %11, %12 : vector<8x2xf32>
    %cst_10 = arith.constant dense<0.000000e+00> : vector<4x2xf32>
    %14 = tpu.matmul %10, %13, %cst_10 {dimension_numbers = #tpu.dot_dimension_numbers<[1], [0], [0], [1], [0, 0, 1, 1], [], []>} : vector<4x8xf32>, vector<8x2xf32>, vector<4x2xf32> -> vector<4x2xf32>
    %15 = vector.extract_strided_slice %14 {offsets = [0, 0], sizes = [4, 1], strides = [1, 1]} : vector<4x2xf32> to vector<4x1xf32>
    %16 = vector.extract_strided_slice %14 {offsets = [0, 1], sizes = [4, 1], strides = [1, 1]} : vector<4x2xf32> to vector<4x1xf32>
    %17 = arith.addf %15, %16 : vector<4x1xf32>
    %18 = arith.negf %17 : vector<4x1xf32>
    %19 = math.exp %18 : vector<4x1xf32>
    %cst_11 = arith.constant 1.000000e+00 : f32
    %20 = vector.broadcast %cst_11 : f32 to vector<4x1xf32>
    %21 = arith.addf %20, %19 : vector<4x1xf32>
    %22 = arith.divf %20, %21 : vector<4x1xf32>
    %cst_12 = arith.constant 1.000000e+00 : f32
    %23 = vector.broadcast %cst_12 : f32 to vector<4x1xf32>
    %24 = arith.addf %22, %23 : vector<4x1xf32>
    %25 = vector.broadcast %24 : vector<4x1xf32> to vector<4x256xf32>
    %26 = arith.mulf %1, %25 : vector<4x256xf32>
    %c0_13 = arith.constant 0 : index
    %c0_14 = arith.constant 0 : index
    %c0_15 = arith.constant 0 : index
    %27 = vector.load %arg4[%c0_13, %c0_14, %c0_15] : memref<1x4x256xf32, #tpu.memory_space<vmem>>, vector<1x4x256xf32>
    %28 = vector.shape_cast %27 : vector<1x4x256xf32> to vector<4x256xf32>
    %29 = vector.shape_cast %26 : vector<4x256xf32> to vector<1x4x256xf32>
    tpu.vector_store %arg4[%c0_13, %c0_14, %c0_15], %29 {strides = array<i32>} : memref<1x4x256xf32, #tpu.memory_space<vmem>>, vector<1x4x256xf32>,
    return
  }
  func.func @transform_0(%arg0: i32) -> (i32, i32, i32) {
    %c0_i32 = arith.constant 0 : i32
    %c0_i32_0 = arith.constant 0 : i32
    %c0_i32_1 = arith.constant 0 : i32
    return %arg0, %c0_i32, %c0_i32_0 : i32, i32, i32
  }
  func.func @transform_1(%arg0: i32) -> (i32, i32) {
    %c0_i32 = arith.constant 0 : i32
    %c0_i32_0 = arith.constant 0 : i32
    %c0_i32_1 = arith.constant 0 : i32
    return %c0_i32, %c0_i32_0 : i32, i32
  }
  func.func @transform_2(%arg0: i32) -> (i32, i32) {
    %c0_i32 = arith.constant 0 : i32
    %c0_i32_0 = arith.constant 0 : i32
    %c0_i32_1 = arith.constant 0 : i32
    return %c0_i32, %c0_i32_0 : i32, i32
  }
  func.func @transform_3(%arg0: i32) -> (i32, i32, i32) {
    %c0_i32 = arith.constant 0 : i32
    %c0_i32_0 = arith.constant 0 : i32
    %c0_i32_1 = arith.constant 0 : i32
    return %arg0, %c0_i32, %c0_i32_0 : i32, i32, i32
  }
}

</mosaic_0001>

<llo_original>
// kernel: tpu_custom_call.1
$region0: #{tpu_custom_call.1}
  #allocation0 [shape = 'u32[]', space=smem, size = 0x4, offset = 0x4, fixed_abs, tag = 'smem constant byte address 0x4 - core index']
  #allocation1 [shape = 'u32[72,128]{1,0:T(1,128)}', space=vmem, size = 0x9000, scoped, tag = 'internal scratch']
  %s0 = inlined_call_operand.hbm [shape: f32[2,4,256], index: 0, kind: input, shape index: {}]
  %s1 = inlined_call_operand.vmem [shape: f32[8,4], index: 1, kind: input, shape index: {}]
  %s2 = inlined_call_operand.vmem [shape: f32[4,8], index: 2, kind: input, shape index: {}]
  %s3 = inlined_call_operand.hbm [shape: f32[2,4,256], index: 3, kind: output, shape index: {}]
  %s4 = sld [smem:[#allocation0]]
  $region49: #{tpu_custom_call.1} parent=0
    _
  %s6 = ssub.s32 1, %s4
  %s7 = scalar_select 0, %s6, %s4
  $region1: #{tpu_custom_call.1} parent=0
    #allocation2 [shape = 'u8[8192]{0}', space=vmem, size = 0x2000, scoped, tag = 'input window, operand 0']
    #allocation3 [shape = 's32[2]{0}', space=sflag, size = 0x8, scoped, tag = 'scoped memory for tpu_custom_call.1']
    #allocation4 [shape = 's32[2]{0}', space=sflag, size = 0x8, scoped, tag = 'scoped memory for tpu_custom_call.1']
    #allocation5 [shape = 'u8[8192]{0}', space=vmem, size = 0x2000, scoped, tag = 'output window, operand 0']
    %8 = vsyncpa [#allocation3], 0
    %s9 = scalar_lea.sflag [#allocation3], 1
    %10 = vsyncpa %s9, 0
    %11 = vsyncpa [#allocation4], 0
    %s12 = scalar_lea.sflag [#allocation4], 1
    %13 = vsyncpa %s12, 0
    loop: start=0, step=1, limit=4
    $region2: #{tpu_custom_call.1} parent=1 // loop_pre_header
      _
    $region3: #{tpu_custom_call.1} parent=1 // loop_header
      %s15 = sphi 0, %s19
      %p16 = scmp.ge.s32.totalorder %s15, 4
      %s25 = sphi 0, %s27
      %s28 = sphi 0, %s25
      %s29 = sphi 0, %s28
      %s45 = sphi 0, %s29
      %s49 = sphi 0, %s49
      %s51 = sphi 0, %s49
      %s52 = sphi 0, %s51
      %s66 = sphi 0, %s52
      %s70 = sphi 0, %s70
      %s72 = sphi 0, %s70
      %s73 = sphi 0, %s72
      %s87 = sphi 0, %s73
      %s93 = sphi 0, %s95
      %s96 = sphi 0, %s93
      %s97 = sphi 0, %s96
      %s113 = sphi 0, %s97
    $region4: #{tpu_custom_call.1} parent=1 // loop_header_branch
      %18 = sbr.rel (%p16) target = $region8
    $region5: #{tpu_custom_call.1} parent=1 // loop_body
      %s20 = ssub.s32 %s15, 1
      %s21 = ssub.s32 %s15, 2
      %s22 = sadd.s32 %s15, 1
      %s23 = ssub.s32 %s15, %s22
      %p24 = scmp.eq.s32.totalorder %s23, 0
      %s26 = sadd.s32 %s25, 1
      %s27 = scalar_select %p24, %s25, %s26
      %p30 = pneg %p24
      %p31 = scmp.eq.s32.totalorder %s15, 1
      %p32 = por %p30, %p31
      %p33 = scmp.ne.s32.totalorder %s25, %s28
      %p34 = scmp.eq.s32.totalorder %s15, 0
      %p35 = por %p33, %p34
      %p36 = scmp.ne.s32.totalorder %s25, %s28
      %p37 = scmp.eq.s32.totalorder %s20, 1
      %p38 = por %p36, %p37
      %p39 = scmp.ne.s32.totalorder %s28, %s29
      %p40 = scmp.eq.s32.totalorder %s20, 0
      %p41 = por %p39, %p40
      %p42 = scmp.ne.s32.totalorder %s28, %s29
      %p43 = scmp.eq.s32.totalorder %s21, 1
      %p44 = por %p42, %p43
      %p46 = scmp.ne.s32.totalorder %s29, %s45
      %p47 = scmp.eq.s32.totalorder %s21, 0
      %p48 = por %p46, %p47
      %s50 = sadd.s32 %s49, 1
      %p53 = scmp.eq.s32.totalorder %s15, 1
      %p54 = scmp.ne.s32.totalorder %s49, %s51
      %p55 = scmp.eq.s32.totalorder %s15, 0
      %p56 = por %p54, %p55
      %p57 = scmp.ne.s32.totalorder %s49, %s51
      %p58 = scmp.eq.s32.totalorder %s20, 1
      %p59 = por %p57, %p58
      %p60 = scmp.ne.s32.totalorder %s51, %s52
      %p61 = scmp.eq.s32.totalorder %s20, 0
      %p62 = por %p60, %p61
      %p63 = scmp.ne.s32.totalorder %s51, %s52
      %p64 = scmp.eq.s32.totalorder %s21, 1
      %p65 = por %p63, %p64
      %p67 = scmp.ne.s32.totalorder %s52, %s66
      %p68 = scmp.eq.s32.totalorder %s21, 0
      %p69 = por %p67, %p68
      %s71 = sadd.s32 %s70, 1
      %p74 = scmp.eq.s32.totalorder %s15, 1
      %p75 = scmp.ne.s32.totalorder %s70, %s72
      %p76 = scmp.eq.s32.totalorder %s15, 0
      %p77 = por %p75, %p76
      %p78 = scmp.ne.s32.totalorder %s70, %s72
      %p79 = scmp.eq.s32.totalorder %s20, 1
      %p80 = por %p78, %p79
      %p81 = scmp.ne.s32.totalorder %s72, %s73
      %p82 = scmp.eq.s32.totalorder %s20, 0
      %p83 = por %p81, %p82
      %p84 = scmp.ne.s32.totalorder %s72, %s73
      %p85 = scmp.eq.s32.totalorder %s21, 1
      %p86 = por %p84, %p85
      %p88 = scmp.ne.s32.totalorder %s73, %s87
      %p89 = scmp.eq.s32.totalorder %s21, 0
      %p90 = por %p88, %p89
      %s91 = ssub.s32 %s15, %s22
      %p92 = scmp.eq.s32.totalorder %s91, 0
      %s94 = sadd.s32 %s93, 1
      %s95 = scalar_select %p92, %s93, %s94
      %p98 = pneg %p92
      %p99 = scmp.eq.s32.totalorder %s15, 1
      %p100 = por %p98, %p99
      %p101 = scmp.ne.s32.totalorder %s93, %s96
      %p102 = scmp.eq.s32.totalorder %s15, 0
      %p103 = por %p101, %p102
      %p104 = scmp.ne.s32.totalorder %s93, %s96
      %p105 = scmp.eq.s32.totalorder %s20, 1
      %p106 = por %p104, %p105
      %p107 = scmp.ne.s32.totalorder %s96, %s97
      %p108 = scmp.eq.s32.totalorder %s20, 0
      %p109 = por %p107, %p108
      %p110 = scmp.ne.s32.totalorder %s96, %s97
      %p111 = scmp.eq.s32.totalorder %s21, 1
      %p112 = por %p110, %p111
      %p114 = scmp.ne.s32.totalorder %s97, %s113
      %p115 = scmp.eq.s32.totalorder %s21, 0
      %p116 = por %p114, %p115
      %p117 = scmp.le.s32.totalorder 1, %s15
      %p118 = scmp.lt.s32.totalorder %s15, 3
      %p119 = pnand %p117, %p118
      %p120 = pneg %p119
      // Predicated region
      $region9: #{tpu_custom_call.1} parent=5 // pred_check
        _
      $region10: #{tpu_custom_call.1} parent=5 // pred_check_branch
        %122 = sbr.rel (%p119) target = $region12
      $region11: #{tpu_custom_call.1} parent=5 // pred_region
        %s123 = ssub.s32 %s15, 1
        // Predicated region
        $region13: #{tpu_custom_call.1} parent=11 // pred_check
          %p124 = pneg %p62
        $region14: #{tpu_custom_call.1} parent=11 // pred_check_branch
          %126 = sbr.rel (%p124) target = $region16
        $region15: #{tpu_custom_call.1} parent=11 // pred_region
          _
        $region16: #{tpu_custom_call.1} parent=11 // pred_fallthru
          _
        // Predicated region
        $region17: #{tpu_custom_call.1} parent=11 // pred_check
          %p127 = pneg %p83
        $region18: #{tpu_custom_call.1} parent=11 // pred_check_branch
          %129 = sbr.rel (%p127) target = $region20
        $region19: #{tpu_custom_call.1} parent=11 // pred_region
          _
        $region20: #{tpu_custom_call.1} parent=11 // pred_fallthru
          _
      $region12: #{tpu_custom_call.1} parent=5 // pred_fallthru
        _
      %p130 = scmp.lt.s32.totalorder %s15, 2
      // Predicated region
      $region21: #{tpu_custom_call.1} parent=5 // pred_check
        %p131 = pneg %p130
      $region22: #{tpu_custom_call.1} parent=5 // pred_check_branch
        %133 = sbr.rel (%p131) target = $region24
      $region23: #{tpu_custom_call.1} parent=5 // pred_region
        // Predicated region
        $region25: #{tpu_custom_call.1} parent=23 // pred_check
          %p134 = pneg %p35
        $region26: #{tpu_custom_call.1} parent=23 // pred_check_branch
          %136 = sbr.rel (%p134) target = $region28
        $region27: #{tpu_custom_call.1} parent=23 // pred_region
          %s137 = sand.u32 %s25, 1
          %s138 = scalar_lea.sflag [#allocation3], %s137
          %s139 = sand.u32 %s25, 1
          %s140 = smul.addr %s139, 8
          %s141 = scalar_lea.vmem [#allocation2], %s140
          %143 = vsyncadd %s138, 0
          %s144 = smul.addr %s15, 2
          %s145 = smul.addr %s144, 4
          %s146 = scalar_lea.hbm %s0, %s145
          %s148 = sshll.u32 %s146, 4
          %s149 = int_to_ptr.hbm [resolvable:$true] %s148
          %s150 = sshll.u32 %s141, 4
          %s151 = int_to_ptr.vmem [resolvable:$true] %s150
          %153 = dma.hbm_to_vmem [thread:$0]  %s149, 128, %s151, %s138
        $region28: #{tpu_custom_call.1} parent=23 // pred_fallthru
          _
      $region24: #{tpu_custom_call.1} parent=5 // pred_fallthru
        _
      %p154 = scmp.le.s32.totalorder 1, %s15
      %p155 = scmp.lt.s32.totalorder %s15, 3
      %p156 = pnand %p154, %p155
      %p157 = pneg %p156
      // Predicated region
      $region29: #{tpu_custom_call.1} parent=5 // pred_check
        _
      $region30: #{tpu_custom_call.1} parent=5 // pred_check_branch
        %159 = sbr.rel (%p156) target = $region32
      $region31: #{tpu_custom_call.1} parent=5 // pred_region
        %s160 = ssub.s32 %s15, 1
        %s161 = sand.u32 %s28, 1
        %s162 = scalar_lea.sflag [#allocation3], %s161
        %s163 = sand.u32 %s28, 1
        %s164 = smul.addr %s163, 8
        %s165 = scalar_lea.vmem [#allocation2], %s164
        // Predicated region
        $region33: #{tpu_custom_call.1} parent=31 // pred_check
          %p166 = pneg %p41
        $region34: #{tpu_custom_call.1} parent=31 // pred_check_branch
          %168 = sbr.rel (%p166) target = $region36
        $region35: #{tpu_custom_call.1} parent=31 // pred_region
          %170 = dma.done %s162, 128
        $region36: #{tpu_custom_call.1} parent=31 // pred_fallthru
          _
        %s171 = sand.u32 %s28, 1
        %s172 = scalar_lea.sflag [#allocation3], %s171
        %s173 = sand.u32 %s28, 1
        %s174 = smul.addr %s173, 8
        %s175 = scalar_lea.vmem [#allocation2], %s174
        %p176 = pneg %p41
        %p177 = pneg %p38
        %p178 = pneg %p62
        %p179 = pneg %p59
        %p180 = pneg %p83
        %p181 = pneg %p80
        %p182 = pneg %p109
        %p183 = pneg %p106
        %s184 = sand.u32 %s96, 1
        %s185 = scalar_lea.sflag [#allocation4], %s184
        %s186 = sand.u32 %s96, 1
        %s187 = smul.addr %s186, 8
        %s188 = scalar_lea.vmem [#allocation5], %s187
        %v189 = vld [vmem:[%s165] sm:$0xff]
        %191 = vst [vmem:[#allocation1] ss:$2 sm:$0xff] %v189
        %v192 = vld.sshfl [vmem:[#allocation1] sm:$0xff pattern:$0x75316420]
        %v193 = vld.sshfl [vmem:[#allocation1 + $0x8] sm:$0xff pattern:$0x75316420]
        %vm196 = vcmask 1043456
        %v197 = vsel %vm196, %v192, 0.0
        %v198 = vsel %vm196, %v193, 0.0
        %v199 = vadd.f32 %v197, %v198
        %200 = vadd.xlane.f32.xlu0 %v199
        %v201 = vpop.xlane.xlu0 %200
        %v202 = vmul.f32 %v201, 0.00390625
        %203 = vst [vmem:[#allocation1] ss:$2 sm:$0xff] %v189
        %v204 = vld.sshfl [vmem:[#allocation1] sm:$0xff pattern:$0x75316420]
        %v205 = vld.sshfl [vmem:[#allocation1 + $0x8] sm:$0xff pattern:$0x75316420]
        %v208 = vsel %vm196, %v204, -inf
        %v209 = vsel %vm196, %v205, -inf
        %v210 = vmax.f32 %v208, %v209
        %211 = vmax.xlane.f32.xlu0 %v210
        %v212 = vpop.xlane.xlu0 %211
        %vm213 = vcmask 7168
        %v214 = vsel %vm213, %v202, %v212
        %v215 = vld [vmem:[%s1] sm:$0xff]
        %v216 = vld [vmem:[%s2] sm:$0xf]
        %vm217 = vcmask 31744
        %v219 = vsel %vm217, %v215, 0
        %v222 = vsel %vm196, %v214, 0
        %224 = vmatpush.msra.mxu0 0.0
        %225 = vmatpush.msra.mxu0 0.0
        %226 = vmatpush.msra.mxu0 0.0
        %227 = vmatpush.msra.mxu0 0.0
        %228 = vmatpush.msra.mxu0 0.0
        %229 = vmatpush.msra.mxu0 0.0
        %230 = vmatpush.msra.mxu0 0.0
        %231 = vmatpush.msra.mxu0 0.0
        %232 = vmatpush.msra.mxu0 0.0
        %233 = vmatpush.msra.mxu0 0.0
        %234 = vmatpush.msra.mxu0 0.0
        %235 = vmatpush.msra.mxu0 0.0
        %236 = vmatpush.msra.mxu0 0.0
        %237 = vmatpush.msra.mxu0 0.0
        %238 = vmatpush.msra.mxu0 0.0
        %239 = vmatpush.msra.mxu0 %v222
        %240 = vmatmul.f32.gmra.mxu0 %v219
        %v241 = vpop.f32.mrf.mxu0
        %v242 = vadd.f32 0.0, %v241
        %243 = vdwg.mxu0
        %v244 = vmax.f32 %v242, 0.0
        %vm245 = vcmask 64512
        %v247 = vsel %vm245, %v216, 0
        %249 = vmatpush.msra.mxu0 0.0
        %250 = vmatpush.msra.mxu0 0.0
        %251 = vmatpush.msra.mxu0 0.0
        %252 = vmatpush.msra.mxu0 0.0
        %253 = vmatpush.msra.mxu0 0.0
        %254 = vmatpush.msra.mxu0 0.0
        %255 = vmatpush.msra.mxu0 0.0
        %256 = vmatpush.msra.mxu0 0.0
        %257 = vmatpush.msra.mxu0 0.0
        %258 = vmatpush.msra.mxu0 0.0
        %259 = vmatpush.msra.mxu0 0.0
        %260 = vmatpush.msra.mxu0 0.0
        %261 = vmatpush.msra.mxu0 0.0
        %262 = vmatpush.msra.mxu0 0.0
        %263 = vmatpush.msra.mxu0 0.0
        %264 = vmatpush.msra.mxu0 %v244
        %265 = vmatmul.f32.gmra.mxu0 %v247
        %v266 = vpop.f32.mrf.mxu0
        %v267 = vadd.f32 0.0, %v266
        %268 = vdwg.mxu0
        %270 = vrot.lane.b32.xlu0 %v267, 127
        %v271 = vpop.permute.xlu0 %270
        %v273 = vadd.f32 %v267, %v271
        %v274 = vxor.u32 %v273, 2147483648
        %v275 = vmul.f32 %v274, 1.442695
        %v276 = vpow.pop %v275
        %v277 = vadd.f32 %v276, 1.0
        %v278 = vrcp.pop %v277
        %v279 = vmul.f32 %v277, %v278
        %v280 = vsub.f32 1.0, %v279
        %v281 = vmul.f32 %v278, %v280
        %v282 = vadd.f32 %v278, %v281
        %vm283 = vweird.f32 %v277
        %vm284 = vweird.f32 %v278
        %vm285 = vmor %vm283, %vm284
        %v286 = vsel %vm285, %v278, %v282
        %v287 = vand.u32 2147483647, %v277
        %vm288 = vcmp.eq.f32.partialorder %v287, 8.507059e+37
        %v289 = vand.u32 %v277, 2147483648
        %v290 = vor.u32 1.1754944e-38, %v289
        %v291 = vsel %vm288, %v290, %v286
        %v292 = vmul.f32 1.0, %v291
        %v293 = vadd.f32 %v292, 1.0
        %295 = vset.pattern.permute.xlu0 0
        %296 = vperm.xlu0 %295, %v293
        %v297 = vpop.permute.xlu0 %296
        %v299 = vunpack.c.l.s4 839922192
        %v300 = vunpack.c.0.s8 %v299
        %v301 = vperm.slane %v297, %v300
        %v303 = vmul.f32 %v189, %v301
        %304 = vst [vmem:[%s188] sm:$0xff] %v303
        %s305 = sand.u32 %s96, 1
        %s306 = scalar_lea.sflag [#allocation4], %s305
        %s307 = sand.u32 %s96, 1
        %s308 = smul.addr %s307, 8
        %s309 = scalar_lea.vmem [#allocation5], %s308
        // Predicated region
        $region37: #{tpu_custom_call.1} parent=31 // pred_check
          %p310 = pneg %p106
        $region38: #{tpu_custom_call.1} parent=31 // pred_check_branch
          %312 = sbr.rel (%p310) target = $region40
        $region39: #{tpu_custom_call.1} parent=31 // pred_region
          %314 = vsyncadd %s306, 0
          %s315 = smul.addr %s20, 2
          %s316 = smul.addr %s315, 4
          %s317 = scalar_lea.hbm %s3, %s316
          %s319 = sshll.u32 %s309, 4
          %s320 = int_to_ptr.vmem [resolvable:$true] %s319
          %s321 = sshll.u32 %s317, 4
          %s322 = int_to_ptr.hbm [resolvable:$true] %s321
          %324 = dma.vmem_to_hbm [thread:$0]  %s320, 128, %s322, %s306
        $region40: #{tpu_custom_call.1} parent=31 // pred_fallthru
          _
      $region32: #{tpu_custom_call.1} parent=5 // pred_fallthru
        _
      %p325 = scmp.le.s32.totalorder 2, %s15
      // Predicated region
      $region41: #{tpu_custom_call.1} parent=5 // pred_check
        %p326 = pneg %p325
      $region42: #{tpu_custom_call.1} parent=5 // pred_check_branch
        %328 = sbr.rel (%p326) target = $region44
      $region43: #{tpu_custom_call.1} parent=5 // pred_region
        %s329 = ssub.s32 %s15, 2
        // Predicated region
        $region45: #{tpu_custom_call.1} parent=43 // pred_check
          %p330 = pneg %p112
        $region46: #{tpu_custom_call.1} parent=43 // pred_check_branch
          %332 = sbr.rel (%p330) target = $region48
        $region47: #{tpu_custom_call.1} parent=43 // pred_region
          %s333 = sand.u32 %s97, 1
          %s334 = scalar_lea.sflag [#allocation4], %s333
          %s335 = sand.u32 %s97, 1
          %s336 = smul.addr %s335, 8
          %s337 = scalar_lea.vmem [#allocation5], %s336
          %339 = dma.done %s334, 128
        $region48: #{tpu_custom_call.1} parent=43 // pred_fallthru
          _
      $region44: #{tpu_custom_call.1} parent=5 // pred_fallthru
        _
    $region6: #{tpu_custom_call.1} parent=1 // loop_footer
      %s19 = sadd.s32 1, %s15
    $region7: #{tpu_custom_call.1} parent=1 // loop_footer_branch
      %14 = sbr.rel target = $region3
    $region8: #{tpu_custom_call.1} parent=1 // loop_exit
      _
    %340 = vsyncpa [#allocation3], 1
    %s341 = scalar_lea.sflag [#allocation3], 1
    %342 = vsyncpa %s341, 1
    %343 = vsyncpa [#allocation4], 1
    %s344 = scalar_lea.sflag [#allocation4], 1
    %345 = vsyncpa %s344, 1

</llo_original>
